<compile_context>
chip_gen: v6e
topology: v6e:2x2x1
jax: 0.10.0
libtpu: 0.0.40
codegen_flags: <defaults>
</compile_context>

<pallas_src>
import functools
import math

import jax
import jax.numpy as jnp
from jax.experimental import pallas as pl
from jax.experimental.pallas import tpu as pltpu

_CLIP_LO = 0.001
_CLIP_HI = 1.0 - 0.001
_LOG_LO = math.log(_CLIP_LO)
_LOG_HI = math.log(_CLIP_HI)


def _round_up(x: int, m: int) -> int:
    return (x + m - 1) // m * m


def _scoring_loss_kernel(conf_ref, fc_ref, gt_ref, out_ref, *,
                         neg_inv_temp: float, batch: int, block_b: int,
                         two_t: int, needs_mask: bool):
    i = pl.program_id(0)

    conf = conf_ref[...].astype(jnp.float32)      # [tb, K]
    fc = fc_ref[...].astype(jnp.float32)          # [tb, K, 2T]  (lane-folded xy)
    gt = gt_ref[...].astype(jnp.float32)          # [tb, 2T]

    # Squared per-coordinate differences on the lane axis.
    diff = fc - gt[:, None, :]                    # [tb, K, 2T]
    sq = diff * diff

    # Pair-sum x/y with an XLU rotate: even lane 2t picks up sq[2t] + sq[2t+1]
    # = dx_t^2 + dy_t^2.  Odd lanes hold invalid pairings -> zero them (all
    # terms are >= 0, so zeros never win the max).
    paired = sq + pltpu.roll(sq, shift=two_t - 1, axis=2)
    lane = jax.lax.broadcasted_iota(jnp.int32, paired.shape, 2)
    d2 = jnp.where((lane & 1) == 0, paired, 0.0)  # [tb, K, 2T]

    # sqrt hoisted after the time-max (monotone on non-negative inputs);
    # -1/temperature folded into one multiply.
    distances = jnp.sqrt(jnp.max(d2, axis=-1)) * neg_inv_temp    # [tb, K]

    # gt confidence target: clamp(softmax(distances)) — as in the reference.
    gm = jnp.max(distances, axis=-1, keepdims=True)
    ge = jnp.exp(distances - gm)
    gt_p = jnp.clip(ge / jnp.sum(ge, axis=-1, keepdims=True), _CLIP_LO, _CLIP_HI)

    # Predicted confidences: clamp(softmax(conf)); log(pred_p) via clipped
    # log-softmax (log is monotone, so the clamp commutes).
    cm = jnp.max(conf, axis=-1, keepdims=True)
    ce = jnp.exp(conf - cm)
    csum = jnp.sum(ce, axis=-1, keepdims=True)
    pred_p = jnp.clip(ce / csum, _CLIP_LO, _CLIP_HI)
    log_pred_p = jnp.clip((conf - cm) - jnp.log(csum), _LOG_LO, _LOG_HI)

    # BCE with reduction='sum' (per-block partial).
    bce = -(gt_p * log_pred_p + (1.0 - gt_p) * jnp.log(1.0 - pred_p))

    if needs_mask:
        last = pl.num_programs(0) - 1

        @pl.when(i == last)
        def _masked_sum():
            row = jax.lax.broadcasted_iota(jnp.int32, bce.shape, 0) + i * block_b
            out_ref[0, 0] = jnp.sum(jnp.where(row < batch, bce, 0.0))

        @pl.when(i != last)
        def _full_sum():
            out_ref[0, 0] = jnp.sum(bce)
    else:
        out_ref[0, 0] = jnp.sum(bce)


def forecasting_scoring_loss(conf: jax.Array,
                             forecasts: jax.Array,
                             gt_traj: jax.Array,
                             temperature: float = 0.1,
                             *,
                             block_b: int | None = None) -> jax.Array:
    """conf: [B,K], forecasts: [B,K,T,2], gt_traj: [B,T,2] -> scalar loss."""
    B, K = conf.shape
    _, _, T, two = forecasts.shape
    assert two == 2 and gt_traj.shape == (B, T, 2)
    two_t = 2 * T

    # Fold the xy dim into the lane axis (contiguous reshape — no HBM copy).
    fc = forecasts.reshape(B, K, two_t)
    gt = gt_traj.reshape(B, two_t)

    # Batch tile: whole batch if it fits, else a multiple of 8 (sublane-safe
    # for the [tb, K] / [tb, 2T] blocks) up to 512 rows.
    tb = min(block_b if block_b is not None else 512, B)
    if tb < B:
        tb = max(8, (tb // 8) * 8)
        tb = min(tb, B)
    nb = pl.cdiv(B, tb)
    needs_mask = (B % tb) != 0

    # Explicit VMEM budget (padded, double-buffered blocks + headroom); fits
    # v5e/v6e (128 MiB) and v7x (64 MiB physical).
    fc_blk = tb * _round_up(K, 8) * _round_up(two_t, 128) * 4
    gt_blk = _round_up(tb, 8) * _round_up(two_t, 128) * 4
    cf_blk = _round_up(tb, 8) * _round_up(K, 128) * 4
    vmem_limit = 2 * (fc_blk + gt_blk + cf_blk) + (8 << 20)
    vmem_limit = max(min(vmem_limit, 64 << 20), 32 << 20)

    cost = pl.CostEstimate(
        flops=int(6 * B * K * T + 16 * B * K),
        transcendentals=int(5 * B * K),
        bytes_accessed=int(conf.size * conf.dtype.itemsize
                           + fc.size * fc.dtype.itemsize
                           + gt.size * gt.dtype.itemsize
                           + 4 * nb),
    )

    kernel = functools.partial(
        _scoring_loss_kernel,
        neg_inv_temp=-1.0 / float(temperature),
        batch=B, block_b=tb, two_t=two_t, needs_mask=needs_mask)

    partials = pl.pallas_call(
        kernel,
        out_shape=jax.ShapeDtypeStruct((nb, 1), jnp.float32),
        grid=(nb,),
        in_specs=[
            pl.BlockSpec((tb, K), lambda i: (i, 0)),
            pl.BlockSpec((tb, K, two_t), lambda i: (i, 0, 0)),
            pl.BlockSpec((tb, two_t), lambda i: (i, 0)),
        ],
        out_specs=pl.BlockSpec((1, 1), lambda i: (i, 0),
                               memory_space=pltpu.MemorySpace.SMEM),
        compiler_params=pltpu.CompilerParams(
            # Per-block partials are independent -> batch axis is parallel
            # (lets both v7x TensorCores split the grid; no-op on v5e/v6e).
            dimension_semantics=("parallel",),
            vmem_limit_bytes=int(vmem_limit)),
        cost_estimate=cost,
    )(conf, fc, gt)

    return jnp.sum(partials)


def _reference_loss(conf, forecasts, gt_traj, temperature=0.1):
    """Pure-JAX reference mirroring the PyTorch forward exactly."""
    gt = gt_traj[:, None, :, :]                                   # [B,1,T,2]
    dist = jnp.sqrt((forecasts[..., 0] - gt[..., 0]) ** 2 +
                    (forecasts[..., 1] - gt[..., 1]) ** 2)        # [B,K,T]
    distances = -jnp.max(dist, axis=-1) / temperature             # [B,K]
    gt_p = jnp.clip(jax.nn.softmax(distances, axis=-1), _CLIP_LO, _CLIP_HI)
    pred_p = jnp.clip(jax.nn.softmax(conf, axis=-1), _CLIP_LO, _CLIP_HI)
    return jnp.sum(-(gt_p * jnp.log(pred_p) + (1 - gt_p) * jnp.log(1 - pred_p)))


if __name__ == "__main__":
    key = jax.random.PRNGKey(0)
    k1, k2, k3 = jax.random.split(key, 3)

    # Small single-block case.
    B, K, T = 4, 6, 64          # batch, forecast modes, timesteps
    conf = jax.random.normal(k1, (B, K), dtype=jnp.float32)
    forecasts = 5.0 * jax.random.normal(k2, (B, K, T, 2), dtype=jnp.float32)
    gt_traj = 5.0 * jax.random.normal(k3, (B, T, 2), dtype=jnp.float32)

    loss = forecasting_scoring_loss(conf, forecasts, gt_traj, temperature=0.1)
    loss = jax.block_until_ready(loss)
    ref = _reference_loss(conf, forecasts, gt_traj, temperature=0.1)
    assert jnp.allclose(loss, ref, rtol=1e-4, atol=1e-4), (loss, ref)

    # Multi-block case exercising the padded last block + per-block partials.
    B2 = 20
    conf2 = jax.random.normal(k1, (B2, K), dtype=jnp.float32)
    forecasts2 = 5.0 * jax.random.normal(k2, (B2, K, T, 2), dtype=jnp.float32)
    gt_traj2 = 5.0 * jax.random.normal(k3, (B2, T, 2), dtype=jnp.float32)

    loss2 = forecasting_scoring_loss(conf2, forecasts2, gt_traj2,
                                     temperature=0.1, block_b=8)
    loss2 = jax.block_until_ready(loss2)
    ref2 = _reference_loss(conf2, forecasts2, gt_traj2, temperature=0.1)
    assert jnp.allclose(loss2, ref2, rtol=1e-4, atol=1e-4), (loss2, ref2)

    print("KERNEL_OK")
</pallas_src>

<mosaic_0001>
module attributes {stable_mosaic.version = 11 : i64} {
  func.func @_scoring_loss_kernel(%arg0: i32, %arg1: memref<4x6xf32, #tpu.memory_space<vmem>>, %arg2: memref<4x6x128xf32, #tpu.memory_space<vmem>>, %arg3: memref<4x128xf32, #tpu.memory_space<vmem>>, %arg4: memref<1x1xf32, #tpu.memory_space<smem>>) attributes {dimension_semantics = [#tpu.dimension_semantics<parallel>], iteration_bounds = array<i64: 1>, scalar_prefetch = 0 : i64, scratch_operands = 0 : i64, tpu.core_type = #tpu.core_type<tc>, window_params = [{transform_indices = @transform_0, window_bounds = array<i64: 4, 6>}, {transform_indices = @transform_1, window_bounds = array<i64: 4, 6, 128>}, {transform_indices = @transform_2, window_bounds = array<i64: 4, 128>}, {transform_indices = @transform_3, window_bounds = array<i64: 1, 1>}]} {
    %c0 = arith.constant 0 : index
    %c0_0 = arith.constant 0 : index
    %0 = vector.load %arg1[%c0, %c0_0] : memref<4x6xf32, #tpu.memory_space<vmem>>, vector<4x6xf32>
    %c0_1 = arith.constant 0 : index
    %c0_2 = arith.constant 0 : index
    %c0_3 = arith.constant 0 : index
    %1 = vector.load %arg2[%c0_1, %c0_2, %c0_3] : memref<4x6x128xf32, #tpu.memory_space<vmem>>, vector<4x6x128xf32>
    %c0_4 = arith.constant 0 : index
    %c0_5 = arith.constant 0 : index
    %2 = vector.load %arg3[%c0_4, %c0_5] : memref<4x128xf32, #tpu.memory_space<vmem>>, vector<4x128xf32>
    %3 = vector.shape_cast %2 : vector<4x128xf32> to vector<4x1x128xf32>
    %4 = vector.broadcast %3 : vector<4x1x128xf32> to vector<4x6x128xf32>
    %5 = arith.subf %1, %4 : vector<4x6x128xf32>
    %6 = arith.mulf %5, %5 : vector<4x6x128xf32>
    %c127_i32 = arith.constant 127 : i32
    %7 = tpu.dynamic_rotate %6 by %c127_i32 dim 2 : vector<4x6x128xf32>, i32 -> vector<4x6x128xf32>
    %8 = arith.addf %6, %7 : vector<4x6x128xf32>
    %9 = tpu.iota {dimensions = array<i32: 2>} : vector<4x6x128xi32>
    %c1_i32 = arith.constant 1 : i32
    %10 = vector.broadcast %c1_i32 : i32 to vector<4x6x128xi32>
    %11 = arith.andi %9, %10 : vector<4x6x128xi32>
    %c0_i32 = arith.constant 0 : i32
    %12 = vector.broadcast %c0_i32 : i32 to vector<4x6x128xi32>
    %13 = arith.cmpi eq, %11, %12 : vector<4x6x128xi32>
    %cst = arith.constant 0.000000e+00 : f32
    %14 = vector.broadcast %cst : f32 to vector<4x6x128xf32>
    %15 = arith.select %13, %8, %14 : vector<4x6x128xi1>, vector<4x6x128xf32>
    %cst_6 = arith.constant dense<0xFF800000> : vector<4x6xf32>
    %16 = vector.multi_reduction <maximumf>, %15, %cst_6 [2] : vector<4x6x128xf32> to vector<4x6xf32>
    %17 = math.sqrt %16 : vector<4x6xf32>
    %cst_7 = arith.constant -1.000000e+01 : f32
    %18 = vector.broadcast %cst_7 : f32 to vector<4x6xf32>
    %19 = arith.mulf %17, %18 : vector<4x6xf32>
    %cst_8 = arith.constant dense<0xFF800000> : vector<4xf32>
    %20 = vector.multi_reduction <maximumf>, %19, %cst_8 [1] : vector<4x6xf32> to vector<4xf32>
    %21 = vector.shape_cast %20 : vector<4xf32> to vector<4x1xf32>
    %22 = vector.broadcast %21 : vector<4x1xf32> to vector<4x6xf32>
    %23 = arith.subf %19, %22 : vector<4x6xf32>
    %24 = math.exp %23 : vector<4x6xf32>
    %cst_9 = arith.constant dense<0.000000e+00> : vector<4xf32>
    %25 = vector.multi_reduction <add>, %24, %cst_9 [1] : vector<4x6xf32> to vector<4xf32>
    %26 = vector.shape_cast %25 : vector<4xf32> to vector<4x1xf32>
    %27 = vector.broadcast %26 : vector<4x1xf32> to vector<4x6xf32>
    %28 = arith.divf %24, %27 : vector<4x6xf32>
    %cst_10 = arith.constant 1.000000e-03 : f32
    %cst_11 = arith.constant 9.990000e-01 : f32
    %29 = vector.broadcast %cst_10 : f32 to vector<4x6xf32>
    %30 = arith.maximumf %29, %28 : vector<4x6xf32>
    %31 = vector.broadcast %cst_11 : f32 to vector<4x6xf32>
    %32 = arith.minimumf %31, %30 : vector<4x6xf32>
    %cst_12 = arith.constant dense<0xFF800000> : vector<4xf32>
    %33 = vector.multi_reduction <maximumf>, %0, %cst_12 [1] : vector<4x6xf32> to vector<4xf32>
    %34 = vector.shape_cast %33 : vector<4xf32> to vector<4x1xf32>
    %35 = vector.broadcast %34 : vector<4x1xf32> to vector<4x6xf32>
    %36 = arith.subf %0, %35 : vector<4x6xf32>
    %37 = math.exp %36 : vector<4x6xf32>
    %cst_13 = arith.constant dense<0.000000e+00> : vector<4xf32>
    %38 = vector.multi_reduction <add>, %37, %cst_13 [1] : vector<4x6xf32> to vector<4xf32>
    %39 = vector.shape_cast %38 : vector<4xf32> to vector<4x1xf32>
    %40 = vector.broadcast %39 : vector<4x1xf32> to vector<4x6xf32>
    %41 = arith.divf %37, %40 : vector<4x6xf32>
    %cst_14 = arith.constant 1.000000e-03 : f32
    %cst_15 = arith.constant 9.990000e-01 : f32
    %42 = vector.broadcast %cst_14 : f32 to vector<4x6xf32>
    %43 = arith.maximumf %42, %41 : vector<4x6xf32>
    %44 = vector.broadcast %cst_15 : f32 to vector<4x6xf32>
    %45 = arith.minimumf %44, %43 : vector<4x6xf32>
    %46 = vector.broadcast %34 : vector<4x1xf32> to vector<4x6xf32>
    %47 = arith.subf %0, %46 : vector<4x6xf32>
    %48 = math.log %39 : vector<4x1xf32>
    %49 = vector.broadcast %48 : vector<4x1xf32> to vector<4x6xf32>
    %50 = arith.subf %47, %49 : vector<4x6xf32>
    %cst_16 = arith.constant -6.90775537 : f32
    %cst_17 = arith.constant -0.00100050028 : f32
    %51 = vector.broadcast %cst_16 : f32 to vector<4x6xf32>
    %52 = arith.maximumf %51, %50 : vector<4x6xf32>
    %53 = vector.broadcast %cst_17 : f32 to vector<4x6xf32>
    %54 = arith.minimumf %53, %52 : vector<4x6xf32>
    %55 = arith.mulf %32, %54 : vector<4x6xf32>
    %cst_18 = arith.constant 1.000000e+00 : f32
    %56 = vector.broadcast %cst_18 : f32 to vector<4x6xf32>
    %57 = arith.subf %56, %32 : vector<4x6xf32>
    %cst_19 = arith.constant 1.000000e+00 : f32
    %58 = vector.broadcast %cst_19 : f32 to vector<4x6xf32>
    %59 = arith.subf %58, %45 : vector<4x6xf32>
    %60 = math.log %59 : vector<4x6xf32>
    %61 = arith.mulf %57, %60 : vector<4x6xf32>
    %62 = arith.addf %55, %61 : vector<4x6xf32>
    %cst_20 = arith.constant 0.000000e+00 : f32
    %63 = vector.broadcast %cst_20 : f32 to vector<4x6xf32>
    %64 = arith.subf %63, %62 : vector<4x6xf32>
    %65 = vector.shape_cast %64 : vector<4x6xf32> to vector<1x4x6xf32>
    %cst_21 = arith.constant dense<0.000000e+00> : vector<1xf32>
    %66 = vector.multi_reduction <add>, %65, %cst_21 [1, 2] : vector<1x4x6xf32> to vector<1xf32>
    %67 = vector.shape_cast %66 : vector<1xf32> to vector<1x1x1xf32>
    %68 = vector.extract %67[0, 0, 0] : f32 from vector<1x1x1xf32>
    %c0_22 = arith.constant 0 : index
    %c0_23 = arith.constant 0 : index
    %69 = memref.load %arg4[%c0_22, %c0_23] : memref<1x1xf32, #tpu.memory_space<smem>>
    memref.store %68, %arg4[%c0_22, %c0_23] : memref<1x1xf32, #tpu.memory_space<smem>>
    return
  }
  func.func @transform_0(%arg0: i32) -> (i32, i32) {
    %c0_i32 = arith.constant 0 : i32
    %c0_i32_0 = arith.constant 0 : i32
    return %arg0, %c0_i32 : i32, i32
  }
  func.func @transform_1(%arg0: i32) -> (i32, i32, i32) {
    %c0_i32 = arith.constant 0 : i32
    %c0_i32_0 = arith.constant 0 : i32
    %c0_i32_1 = arith.constant 0 : i32
    return %arg0, %c0_i32, %c0_i32_0 : i32, i32, i32
  }
  func.func @transform_2(%arg0: i32) -> (i32, i32) {
    %c0_i32 = arith.constant 0 : i32
    %c0_i32_0 = arith.constant 0 : i32
    return %arg0, %c0_i32 : i32, i32
  }
  func.func @transform_3(%arg0: i32) -> (i32, i32) {
    %c0_i32 = arith.constant 0 : i32
    %c0_i32_0 = arith.constant 0 : i32
    return %arg0, %c0_i32 : i32, i32
  }
}

</mosaic_0001>

<llo_original>
// kernel: tpu_custom_call.1
$region0: #{tpu_custom_call.1}
  #allocation0 [shape = 'u32[]', space=smem, size = 0x4, offset = 0x4, fixed_abs, tag = 'smem constant byte address 0x4 - core index']
  #allocation1 [shape = 'u32[144,128]{1,0:T(1,128)}', space=vmem, size = 0x12000, scoped, tag = 'internal scratch']
  %s0 = inlined_call_operand.vmem [shape: f32[4,6], index: 0, kind: input, shape index: {}]
  %s1 = inlined_call_operand.vmem [shape: f32[4,6,128], index: 1, kind: input, shape index: {}]
  %s2 = inlined_call_operand.vmem [shape: f32[4,128], index: 2, kind: input, shape index: {}]
  %s3 = inlined_call_operand.hbm [shape: f32[1,1], index: 3, kind: output, shape index: {}]
  %s4 = sld [smem:[#allocation0]]
  $region22: #{tpu_custom_call.1} parent=0
    _
  %s6 = ssub.s32 1, %s4
  %s7 = scalar_select 0, %s6, %s4
  $region1: #{tpu_custom_call.1} parent=0
    #allocation2 [shape = 'u8[512]{0}', space=smem, size = 0x200, scoped, tag = 'output window, operand 0, single buffered']
    #allocation3 [shape = 's32[1]{0}', space=sflag, size = 0x4, scoped, tag = 'scoped memory for tpu_custom_call.1']
    %8 = vsyncpa [#allocation3], 0
    // Predicated region
    $region2: #{tpu_custom_call.1} parent=1 // pred_check
      _
    $region3: #{tpu_custom_call.1} parent=1 // pred_check_branch
      %10 = sbr.rel (0) target = $region5
    $region4: #{tpu_custom_call.1} parent=1 // pred_region
      _
    $region5: #{tpu_custom_call.1} parent=1 // pred_fallthru
      _
    // Predicated region
    $region6: #{tpu_custom_call.1} parent=1 // pred_check
      _
    $region7: #{tpu_custom_call.1} parent=1 // pred_check_branch
      %12 = sbr.rel (0) target = $region9
    $region8: #{tpu_custom_call.1} parent=1 // pred_region
      _
    $region9: #{tpu_custom_call.1} parent=1 // pred_fallthru
      _
    // Predicated region
    $region10: #{tpu_custom_call.1} parent=1 // pred_check
      _
    $region11: #{tpu_custom_call.1} parent=1 // pred_check_branch
      %14 = sbr.rel (0) target = $region13
    $region12: #{tpu_custom_call.1} parent=1 // pred_region
      _
    $region13: #{tpu_custom_call.1} parent=1 // pred_fallthru
      _
    %v15 = vld [vmem:[%s0] sm:$0xf]
    %v16 = vld [vmem:[%s1] sm:$0x3f]
    %v17 = vld [vmem:[%s1 + $0x8] sm:$0x3f]
    %v18 = vld [vmem:[%s1 + $0x10] sm:$0x3f]
    %v19 = vld [vmem:[%s1 + $0x18] sm:$0x3f]
    %v20 = vld [vmem:[%s2] sm:$0xf]
    %v23 = vunpack.c.l.s4 1966171168
    %v24 = vunpack.c.0.s8 %v23
    %v25 = vlaneseq
    %v26 = vshrl.u32 %v25, 7
    %v27 = vsub.s32 %v24, %v26
    %v28 = vrot.slane %v20, %v27
    %v29 = vcombine.high %v28, %v28
    %v31 = vunpack.c.l.s4 1966171168
    %v32 = vunpack.c.0.s8 %v31
    %v33 = vlaneseq
    %v34 = vshrl.u32 %v33, 7
    %v35 = vsub.s32 %v32, %v34
    %v36 = vrot.slane %v28, %v35
    %v38 = vunpack.c.l.s4 1966171168
    %v39 = vunpack.c.0.s8 %v38
    %v40 = vlaneseq
    %v41 = vshrl.u32 %v40, 7
    %v42 = vsub.s32 %v39, %v41
    %v43 = vrot.slane %v29, %v42
    %v44 = vcombine.high %v36, %v36
    %v45 = vcombine.high %v43, %v43
    %v46 = vlaneseq
    %v47 = vshrl.u32 %v46, 7
    %v48 = vsub.s32 0, %v47
    %v49 = vrot.slane %v36, %v48
    %v50 = vlaneseq
    %v51 = vshrl.u32 %v50, 7
    %v52 = vsub.s32 0, %v51
    %v53 = vrot.slane %v43, %v52
    %v54 = vlaneseq
    %v55 = vshrl.u32 %v54, 7
    %v56 = vsub.s32 0, %v55
    %v57 = vrot.slane %v44, %v56
    %v58 = vlaneseq
    %v59 = vshrl.u32 %v58, 7
    %v60 = vsub.s32 0, %v59
    %v61 = vrot.slane %v45, %v60
    %v66 = vsub.f32 %v16, %v49
    %v67 = vsub.f32 %v17, %v53
    %v68 = vsub.f32 %v18, %v57
    %v69 = vsub.f32 %v19, %v61
    %v70 = vmul.f32 %v66, %v66
    %v71 = vmul.f32 %v67, %v67
    %v72 = vmul.f32 %v68, %v68
    %v73 = vmul.f32 %v69, %v69
    %74 = vrot.lane.b32.xlu0 %v70, 127
    %v75 = vpop.permute.xlu0 %74
    %76 = vrot.lane.b32.xlu0 %v71, 127
    %v77 = vpop.permute.xlu0 %76
    %78 = vrot.lane.b32.xlu0 %v72, 127
    %v79 = vpop.permute.xlu0 %78
    %80 = vrot.lane.b32.xlu0 %v73, 127
    %v81 = vpop.permute.xlu0 %80
    %v82 = vadd.f32 %v70, %v75
    %v83 = vadd.f32 %v71, %v77
    %v84 = vadd.f32 %v72, %v79
    %v85 = vadd.f32 %v73, %v81
    %v86 = vlaneseq
    %v87 = vand.u32 %v86, 127
    %v88 = vand.u32 %v87, 1
    %vm89 = vcmp.eq.s32.totalorder %v88, 0
    %v90 = vsel %vm89, %v82, 0.0
    %v91 = vsel %vm89, %v83, 0.0
    %v92 = vsel %vm89, %v84, 0.0
    %v93 = vsel %vm89, %v85, 0.0
    %vm94 = vcmask 1045504
    %v95 = vsel %vm94, %v90, -inf
    %96 = vmax.xlane.f32.xlu0 %v95
    %v97 = vpop.xlane.xlu0 %96
    %v98 = vsel %vm94, %v91, -inf
    %99 = vmax.xlane.f32.xlu0 %v98
    %v100 = vpop.xlane.xlu0 %99
    %v101 = vsel %vm94, %v92, -inf
    %102 = vmax.xlane.f32.xlu0 %v101
    %v103 = vpop.xlane.xlu0 %102
    %v104 = vsel %vm94, %v93, -inf
    %105 = vmax.xlane.f32.xlu0 %v104
    %v106 = vpop.xlane.xlu0 %105
    %v107 = vrsqrt.pop %v97
    %v108 = vmul.f32 %v97, %v107
    %vm109 = vcmp.eq.f32.partialorder %v97, inf
    %v110 = vsel %vm109, %v97, %v108
    %vm111 = vcmp.eq.f32.partialorder %v97, 0.0
    %v112 = vand.u32 %v97, 2147483648
    %v113 = vsel %vm111, %v112, %v110
    %v114 = vrsqrt.pop %v100
    %v115 = vmul.f32 %v100, %v114
    %vm116 = vcmp.eq.f32.partialorder %v100, inf
    %v117 = vsel %vm116, %v100, %v115
    %vm118 = vcmp.eq.f32.partialorder %v100, 0.0
    %v119 = vand.u32 %v100, 2147483648
    %v120 = vsel %vm118, %v119, %v117
    %v121 = vrsqrt.pop %v103
    %v122 = vmul.f32 %v103, %v121
    %vm123 = vcmp.eq.f32.partialorder %v103, inf
    %v124 = vsel %vm123, %v103, %v122
    %vm125 = vcmp.eq.f32.partialorder %v103, 0.0
    %v126 = vand.u32 %v103, 2147483648
    %v127 = vsel %vm125, %v126, %v124
    %v128 = vrsqrt.pop %v106
    %v129 = vmul.f32 %v106, %v128
    %vm130 = vcmp.eq.f32.partialorder %v106, inf
    %v131 = vsel %vm130, %v106, %v129
    %vm132 = vcmp.eq.f32.partialorder %v106, 0.0
    %v133 = vand.u32 %v106, 2147483648
    %v134 = vsel %vm132, %v133, %v131
    %v135 = vmul.f32 %v113, -10.0
    %v136 = vmul.f32 %v120, -10.0
    %v137 = vmul.f32 %v127, -10.0
    %v138 = vmul.f32 %v134, -10.0
    %v143 = vlaneseq
    %v144 = vshrl.u32 %v143, 7
    %v145 = vsub.s32 %v87, %v144
    %v146 = vrot.slane %v135, %v145
    %v147 = vlaneseq
    %v148 = vshrl.u32 %v147, 7
    %v149 = vsub.s32 %v87, %v148
    %v150 = vrot.slane %v136, %v149
    %v151 = vlaneseq
    %v152 = vshrl.u32 %v151, 7
    %v153 = vsub.s32 %v87, %v152
    %v154 = vrot.slane %v137, %v153
    %v155 = vlaneseq
    %v156 = vshrl.u32 %v155, 7
    %v157 = vsub.s32 %v87, %v156
    %v158 = vrot.slane %v138, %v157
    %vm159 = vcmask 1041409
    %v160 = vsel %vm159, %v150, %v146
    %vm161 = vcmask 1042434
    %v162 = vsel %vm161, %v154, %v160
    %vm163 = vcmask 1043459
    %v164 = vsel %vm163, %v158, %v162
    %vm166 = vcmask 44032
    %v167 = vsel %vm166, %v164, -inf
    %168 = vmax.xlane.f32.xlu0 %v167
    %v169 = vpop.xlane.xlu0 %168
    %v171 = vlaneseq
    %v172 = vshrl.u32 %v171, 7
    %v173 = vsub.s32 0, %v172
    %v174 = vrot.slane %v169, %v173
    %v175 = vlaneseq
    %v176 = vshrl.u32 %v175, 7
    %v177 = vsub.s32 1, %v176
    %v178 = vrot.slane %v169, %v177
    %v179 = vlaneseq
    %v180 = vshrl.u32 %v179, 7
    %v181 = vsub.s32 2, %v180
    %v182 = vrot.slane %v169, %v181
    %v183 = vlaneseq
    %v184 = vshrl.u32 %v183, 7
    %v185 = vsub.s32 3, %v184
    %v186 = vrot.slane %v169, %v185
    %v191 = vsub.f32 %v135, %v174
    %v192 = vsub.f32 %v136, %v178
    %v193 = vsub.f32 %v137, %v182
    %v194 = vsub.f32 %v138, %v186
    %v195 = vmul.f32 %v191, 1.442695
    %v196 = vpow.pop %v195
    %v197 = vmul.f32 %v192, 1.442695
    %v198 = vpow.pop %v197
    %v199 = vmul.f32 %v193, 1.442695
    %v200 = vpow.pop %v199
    %v201 = vmul.f32 %v194, 1.442695
    %v202 = vpow.pop %v201
    %207 = vset.pattern.permute.xlu0 0
    %208 = vperm.xlu0 %207, %v196
    %v209 = vpop.permute.xlu0 %208
    %210 = vset.pattern.permute.xlu0 0
    %211 = vperm.xlu0 %210, %v198
    %v212 = vpop.permute.xlu0 %211
    %213 = vset.pattern.permute.xlu0 0
    %214 = vperm.xlu0 %213, %v200
    %v215 = vpop.permute.xlu0 %214
    %216 = vset.pattern.permute.xlu0 0
    %217 = vperm.xlu0 %216, %v202
    %v218 = vpop.permute.xlu0 %217
    %v219 = vlaneseq
    %v220 = vshrl.u32 %v219, 7
    %v221 = vsub.s32 %v87, %v220
    %v222 = vrot.slane %v209, %v221
    %v223 = vlaneseq
    %v224 = vshrl.u32 %v223, 7
    %v225 = vsub.s32 %v87, %v224
    %v226 = vrot.slane %v212, %v225
    %v227 = vlaneseq
    %v228 = vshrl.u32 %v227, 7
    %v229 = vsub.s32 %v87, %v228
    %v230 = vrot.slane %v215, %v229
    %v231 = vlaneseq
    %v232 = vshrl.u32 %v231, 7
    %v233 = vsub.s32 %v87, %v232
    %v234 = vrot.slane %v218, %v233
    %v235 = vsel %vm159, %v226, %v222
    %v236 = vsel %vm161, %v230, %v235
    %v237 = vsel %vm163, %v234, %v236
    %v239 = vsel %vm166, %v237, 0.0
    %240 = vadd.xlane.f32.xlu0 %v239
    %v241 = vpop.xlane.xlu0 %240
    %v243 = vlaneseq
    %v244 = vshrl.u32 %v243, 7
    %v245 = vsub.s32 0, %v244
    %v246 = vrot.slane %v241, %v245
    %v247 = vlaneseq
    %v248 = vshrl.u32 %v247, 7
    %v249 = vsub.s32 1, %v248
    %v250 = vrot.slane %v241, %v249
    %v251 = vlaneseq
    %v252 = vshrl.u32 %v251, 7
    %v253 = vsub.s32 2, %v252
    %v254 = vrot.slane %v241, %v253
    %v255 = vlaneseq
    %v256 = vshrl.u32 %v255, 7
    %v257 = vsub.s32 3, %v256
    %v258 = vrot.slane %v241, %v257
    %v263 = vrcp.pop %v246
    %v264 = vmul.f32 %v196, %v263
    %v265 = vrcp.pop %v250
    %v266 = vmul.f32 %v198, %v265
    %v267 = vrcp.pop %v254
    %v268 = vmul.f32 %v200, %v267
    %v269 = vrcp.pop %v258
    %v270 = vmul.f32 %v202, %v269
    %v271 = vmax.f32 %v264, 0.001
    %v272 = vmax.f32 %v266, 0.001
    %v273 = vmax.f32 %v268, 0.001
    %v274 = vmax.f32 %v270, 0.001
    %v275 = vmin.f32 %v271, 0.999
    %v276 = vmin.f32 %v272, 0.999
    %v277 = vmin.f32 %v273, 0.999
    %v278 = vmin.f32 %v274, 0.999
    %v279 = vsel %vm166, %v15, -inf
    %280 = vmax.xlane.f32.xlu0 %v279
    %v281 = vpop.xlane.xlu0 %280
    %v282 = vsub.f32 %v15, %v281
    %v283 = vmul.f32 %v282, 1.442695
    %v284 = vpow.pop %v283
    %v285 = vsel %vm166, %v284, 0.0
    %286 = vadd.xlane.f32.xlu0 %v285
    %v287 = vpop.xlane.xlu0 %286
    %v288 = vrcp.pop %v287
    %v289 = vmul.f32 %v284, %v288
    %v290 = vmax.f32 %v289, 0.001
    %v291 = vmin.f32 %v290, 0.999
    %v292 = vlog2.pop %v287
    %v293 = vmul.f32 %v292, 0.6931472
    %v294 = vsub.f32 %v282, %v293
    %v295 = vmax.f32 %v294, -6.9077554
    %v296 = vmin.f32 %v295, -0.0010005003
    %v298 = vlaneseq
    %v299 = vshrl.u32 %v298, 7
    %v300 = vsub.s32 0, %v299
    %v301 = vrot.slane %v296, %v300
    %303 = vbcast.lane.b32.xlu0 %v301, 256
    %v304 = vpop.permute.xlu0 %303
    %v305 = vlaneseq
    %v306 = vshrl.u32 %v305, 7
    %v307 = vsub.s32 1, %v306
    %v308 = vrot.slane %v296, %v307
    %310 = vbcast.lane.b32.xlu0 %v308, 256
    %v311 = vpop.permute.xlu0 %310
    %v312 = vlaneseq
    %v313 = vshrl.u32 %v312, 7
    %v314 = vsub.s32 2, %v313
    %v315 = vrot.slane %v296, %v314
    %317 = vbcast.lane.b32.xlu0 %v315, 256
    %v318 = vpop.permute.xlu0 %317
    %v319 = vlaneseq
    %v320 = vshrl.u32 %v319, 7
    %v321 = vsub.s32 3, %v320
    %v322 = vrot.slane %v296, %v321
    %324 = vbcast.lane.b32.xlu0 %v322, 256
    %v325 = vpop.permute.xlu0 %324
    %v330 = vmul.f32 %v275, %v304
    %v331 = vmul.f32 %v276, %v311
    %v332 = vmul.f32 %v277, %v318
    %v333 = vmul.f32 %v278, %v325
    %v334 = vsub.f32 1.0, %v275
    %v335 = vsub.f32 1.0, %v276
    %v336 = vsub.f32 1.0, %v277
    %v337 = vsub.f32 1.0, %v278
    %v338 = vsub.f32 1.0, %v291
    %v339 = vlog2.pop %v338
    %v340 = vmul.f32 %v339, 0.6931472
    %v342 = vlaneseq
    %v343 = vshrl.u32 %v342, 7
    %v344 = vsub.s32 0, %v343
    %v345 = vrot.slane %v340, %v344
    %347 = vbcast.lane.b32.xlu0 %v345, 256
    %v348 = vpop.permute.xlu0 %347
    %v349 = vlaneseq
    %v350 = vshrl.u32 %v349, 7
    %v351 = vsub.s32 1, %v350
    %v352 = vrot.slane %v340, %v351
    %354 = vbcast.lane.b32.xlu0 %v352, 256
    %v355 = vpop.permute.xlu0 %354
    %v356 = vlaneseq
    %v357 = vshrl.u32 %v356, 7
    %v358 = vsub.s32 2, %v357
    %v359 = vrot.slane %v340, %v358
    %361 = vbcast.lane.b32.xlu0 %v359, 256
    %v362 = vpop.permute.xlu0 %361
    %v363 = vlaneseq
    %v364 = vshrl.u32 %v363, 7
    %v365 = vsub.s32 3, %v364
    %v366 = vrot.slane %v340, %v365
    %368 = vbcast.lane.b32.xlu0 %v366, 256
    %v369 = vpop.permute.xlu0 %368
    %v374 = vmul.f32 %v334, %v348
    %v375 = vmul.f32 %v335, %v355
    %v376 = vmul.f32 %v336, %v362
    %v377 = vmul.f32 %v337, %v369
    %v378 = vadd.f32 %v330, %v374
    %v379 = vadd.f32 %v331, %v375
    %v380 = vadd.f32 %v332, %v376
    %v381 = vadd.f32 %v333, %v377
    %v382 = vsub.f32 0.0, %v378
    %v383 = vsub.f32 0.0, %v379
    %v384 = vsub.f32 0.0, %v380
    %v385 = vsub.f32 0.0, %v381
    %390 = vset.pattern.permute.xlu0 0
    %391 = vperm.xlu0 %390, %v382
    %v392 = vpop.permute.xlu0 %391
    %393 = vset.pattern.permute.xlu0 0
    %394 = vperm.xlu0 %393, %v383
    %v395 = vpop.permute.xlu0 %394
    %396 = vset.pattern.permute.xlu0 0
    %397 = vperm.xlu0 %396, %v384
    %v398 = vpop.permute.xlu0 %397
    %399 = vset.pattern.permute.xlu0 0
    %400 = vperm.xlu0 %399, %v385
    %v401 = vpop.permute.xlu0 %400
    %v402 = vlaneseq
    %v403 = vshrl.u32 %v402, 7
    %v404 = vsub.s32 %v87, %v403
    %v405 = vrot.slane %v392, %v404
    %v406 = vlaneseq
    %v407 = vshrl.u32 %v406, 7
    %v408 = vsub.s32 %v87, %v407
    %v409 = vrot.slane %v395, %v408
    %v410 = vlaneseq
    %v411 = vshrl.u32 %v410, 7
    %v412 = vsub.s32 %v87, %v411
    %v413 = vrot.slane %v398, %v412
    %v414 = vlaneseq
    %v415 = vshrl.u32 %v414, 7
    %v416 = vsub.s32 %v87, %v415
    %v417 = vrot.slane %v401, %v416
    %v418 = vsel %vm159, %v409, %v405
    %v419 = vsel %vm161, %v413, %v418
    %v420 = vsel %vm163, %v417, %v419
    %v422 = vsel %vm166, %v420, 0.0
    %423 = vadd.xlane.f32.xlu0 %v422
    %v424 = vpop.xlane.xlu0 %423
    %v425 = vrot.slane %v424, 4
    %v426 = vadd.f32 %v424, %v425
    %v427 = vrot.slane %v426, 2
    %v428 = vadd.f32 %v426, %v427
    %v429 = vrot.slane %v428, 1
    %v430 = vadd.f32 %v428, %v429
    %s431 = vtos %v430
    %s432 = scalar_lea.smem [#allocation2], 0
    %433 = sst [smem:[%s432]] %s431
    // Predicated region
    $region14: #{tpu_custom_call.1} parent=1 // pred_check
      _
    $region15: #{tpu_custom_call.1} parent=1 // pred_check_branch
      %435 = sbr.rel (0) target = $region17
    $region16: #{tpu_custom_call.1} parent=1 // pred_region
      %s437 = ssub.s32 16, 16
      %438 = vsyncadd [#allocation3], %s437
      %441 = dma.smem_to_hbm [#allocation2], 16, %s3, [#allocation3]
    $region17: #{tpu_custom_call.1} parent=1 // pred_fallthru
      _
    // Predicated region
    $region18: #{tpu_custom_call.1} parent=1 // pred_check
      _
    $region19: #{tpu_custom_call.1} parent=1 // pred_check_branch
      %443 = sbr.rel (0) target = $region21
    $region20: #{tpu_custom_call.1} parent=1 // pred_region
      %444 = dma.done [#allocation3], 16
    $region21: #{tpu_custom_call.1} parent=1 // pred_fallthru
      _
    %445 = sfence
    %446 = vsyncpa [#allocation3], 1

</llo_original>
